<compile_context>
chip_gen: v5e
topology: v5e:2x2
jax: 0.10.0
libtpu: 0.0.40
codegen_flags: <defaults>
</compile_context>

<pallas_src>
import functools

import jax
import jax.numpy as jnp
from jax import lax
from jax.experimental import pallas as pl
from jax.experimental.pallas import tpu as pltpu

_LANE = 128
_TS_CAP = 128 * _LANE  # 16384 lanes -> per-step chunk unroll bounded at 128


def _round_up(x, m):
    return (x + m - 1) // m * m


def _avg_pool_head_kernel(x_ref, w_ref, b_ref, o_ref, acc_ref, *,
                          hw, ts, inv_hw, needs_mask):
    # x_ref:   (TB, C, TS)       spatial tile, native dtype
    # w_ref:   (C, OUT_PAD)      transposed weight, native dtype
    # b_ref:   (1, OUT_PAD)      bias, f32
    # o_ref:   (TB, OUT_PAD)     output tile
    # acc_ref: (TB, C, 128)      f32 lane-resident partial sums (VMEM scratch)
    k = pl.program_id(1)

    @pl.when(k == 0)
    def _():
        acc_ref[...] = jnp.zeros_like(acc_ref)

    x = x_ref[...].astype(jnp.float32)
    if needs_mask:
        # Ragged last spatial tile: out-of-range block reads are garbage, so
        # zero-mask lanes past the valid spatial extent (VPU select only).
        pos = k * ts + lax.broadcasted_iota(jnp.int32, x.shape, dimension=2)
        x = jnp.where(pos < hw, x, 0.0)

    # Deferred cross-lane reduction: fold TS lanes into 128 lane-resident
    # partial sums with plain VPU adds (no per-step XLU reduce / relayout).
    acc = acc_ref[...]
    for j in range(ts // _LANE):
        acc = acc + x[..., j * _LANE:(j + 1) * _LANE]
    acc_ref[...] = acc

    @pl.when(k == pl.num_programs(1) - 1)
    def _():
        # One XLU lane-reduce total, mean scale in f32, then MXU matmul + bias.
        pooled = jnp.sum(acc_ref[...], axis=-1) * inv_hw          # (TB, C) f32
        out = jnp.dot(pooled.astype(w_ref.dtype), w_ref[...],
                      preferred_element_type=jnp.float32)
        o_ref[...] = (out + b_ref[...]).astype(o_ref.dtype)


def avg_pool_head(x, weight, bias):
    """x: (B, C, H, W); weight: (out_channels, C); bias: (out_channels,)."""
    B, C, H, W = x.shape
    out_channels = weight.shape[0]
    HW = H * W

    # ---- per-generation VMEM budget --------------------------------------
    try:
        vmem_cap = int(pltpu.get_tpu_info().vmem_capacity_bytes)
    except Exception:
        vmem_cap = 64 * 1024 * 1024  # conservative (v7x-sized) fallback
    vmem_limit = int(min((vmem_cap * 3) // 4, 112 * 1024 * 1024))

    OUT_PAD = _round_up(out_channels, _LANE)  # lane-dense output width

    # Batch tile: aim for >=2 blocks along the "parallel" axis when B permits
    # (v7x has 2 TensorCores); TS (DMA burst length) gets priority over TB.
    TB = min(_round_up(max(pl.cdiv(B, 2), 1), 8), 64)

    x_elem = jnp.dtype(x.dtype).itemsize
    w_elem = jnp.dtype(weight.dtype).itemsize

    # Budget ALL resident buffers, not just x.
    fixed = (2 * C * OUT_PAD * w_elem        # weight (assume 2 bufs worst case)
             + 2 * OUT_PAD * 4               # bias
             + 2 * TB * OUT_PAD * x_elem     # output
             + TB * C * _LANE * 4)           # f32 accumulator scratch
    margin = 2 * 1024 * 1024
    x_budget = max(vmem_limit - fixed - margin, 2 * TB * C * _LANE * x_elem)

    max_ts = max(_LANE, (x_budget // (2 * TB * C * x_elem)) // _LANE * _LANE)
    TS = min(_round_up(HW, _LANE), max_ts, _TS_CAP)

    grid = (pl.cdiv(B, TB), pl.cdiv(HW, TS))
    needs_mask = (HW % TS) != 0

    # No jnp.pad of x: the reshape is layout-only; raggedness handled in-kernel.
    x_flat = x.reshape(B, C, HW)
    w_t = jnp.pad(weight.T, ((0, 0), (0, OUT_PAD - out_channels)))
    b2 = jnp.pad(bias.astype(jnp.float32),
                 (0, OUT_PAD - out_channels)).reshape(1, OUT_PAD)

    kernel = functools.partial(_avg_pool_head_kernel, hw=HW, ts=TS,
                               inv_hw=float(1.0 / HW), needs_mask=needs_mask)

    def _build_call(single_buffer_consts):
        def const_spec(shape):
            ndim = len(shape)
            idx = lambda i, k: (0,) * ndim
            if single_buffer_consts:
                return pl.BlockSpec(shape, idx, pipeline_mode=pl.Buffered(1))
            return pl.BlockSpec(shape, idx)

        return pl.pallas_call(
            kernel,
            out_shape=jax.ShapeDtypeStruct((B, OUT_PAD), x.dtype),
            grid_spec=pltpu.PrefetchScalarGridSpec(
                num_scalar_prefetch=0,
                grid=grid,
                in_specs=[
                    pl.BlockSpec((TB, C, TS), lambda i, k: (i, 0, k)),
                    const_spec((C, OUT_PAD)),
                    const_spec((1, OUT_PAD)),
                ],
                out_specs=pl.BlockSpec((TB, OUT_PAD), lambda i, k: (i, 0)),
                scratch_shapes=[pltpu.VMEM((TB, C, _LANE), jnp.float32)],
            ),
            compiler_params=pltpu.CompilerParams(
                dimension_semantics=("parallel", "arbitrary"),
                vmem_limit_bytes=vmem_limit,
            ),
        )

    try:
        out_padded = _build_call(True)(x_flat, w_t, b2)
    except Exception:
        # Fallback: default (double-buffered) specs for the tiny const blocks.
        out_padded = _build_call(False)(x_flat, w_t, b2)

    return out_padded[:, :out_channels]


def reference_avg_pool_head(x, weight, bias):
    pooled = jnp.mean(x.astype(jnp.float32), axis=(2, 3))     # (B, C)
    return pooled @ weight.astype(jnp.float32).T + bias.astype(jnp.float32)


if __name__ == "__main__":
    # Module config: in_channels=4, out_channels=8, fea_map_size=16
    B, C, H, W = 2, 4, 16, 16
    out_channels = 8

    key = jax.random.PRNGKey(0)
    kx, kw, kb = jax.random.split(key, 3)

    x = jax.random.normal(kx, (B, C, H, W), dtype=jnp.float32)

    # Deterministic init mimicking nn.Linear: uniform(-1/sqrt(in), 1/sqrt(in))
    bound = 1.0 / jnp.sqrt(jnp.float32(C))
    weight = jax.random.uniform(kw, (out_channels, C), jnp.float32, -bound, bound)
    bias = jax.random.uniform(kb, (out_channels,), jnp.float32, -bound, bound)

    out = avg_pool_head(x, weight, bias)
    out = jax.block_until_ready(out)

    ref = reference_avg_pool_head(x, weight, bias)
    assert out.shape == (B, out_channels), out.shape
    assert jnp.allclose(out, ref, atol=1e-5, rtol=1e-5), "mismatch vs reference"

    print("KERNEL_OK")
</pallas_src>

<mosaic_0001>
module attributes {stable_mosaic.version = 11 : i64} {
  func.func @_avg_pool_head_kernel(%arg0: i32, %arg1: i32, %arg2: memref<8x4x256xf32, #tpu.memory_space<vmem>>, %arg3: memref<4x128xf32, #tpu.memory_space<vmem>>, %arg4: memref<1x128xf32, #tpu.memory_space<vmem>>, %arg5: memref<8x128xf32, #tpu.memory_space<vmem>>, %arg6: memref<8x4x128xf32, #tpu.memory_space<vmem>>) attributes {dimension_semantics = [#tpu.dimension_semantics<parallel>, #tpu.dimension_semantics<arbitrary>], iteration_bounds = array<i64: 1, 1>, scalar_prefetch = 0 : i64, scratch_operands = 1 : i64, tpu.core_type = #tpu.core_type<tc>, window_params = [{transform_indices = @transform_0, window_bounds = array<i64: 8, 4, 256>}, {pipeline_mode = #tpu.pipeline_mode<synchronous>, transform_indices = @transform_1, window_bounds = array<i64: 4, 128>}, {pipeline_mode = #tpu.pipeline_mode<synchronous>, transform_indices = @transform_2, window_bounds = array<i64: 1, 128>}, {transform_indices = @transform_3, window_bounds = array<i64: 8, 128>}]} {
    %c0_i32 = arith.constant 0 : i32
    %0 = arith.cmpi eq, %arg1, %c0_i32 : i32
    %1 = arith.extui %0 : i1 to i32
    %c0_i32_0 = arith.constant 0 : i32
    %2 = arith.cmpi ne, %1, %c0_i32_0 : i32
    scf.if %2 {
      %cst = arith.constant 0.000000e+00 : f32
      %13 = vector.broadcast %cst : f32 to vector<8x4x128xf32>
      %c0_11 = arith.constant 0 : index
      %c0_12 = arith.constant 0 : index
      %c0_13 = arith.constant 0 : index
      %14 = vector.load %arg6[%c0_11, %c0_12, %c0_13] : memref<8x4x128xf32, #tpu.memory_space<vmem>>, vector<8x4x128xf32>
      tpu.vector_store %arg6[%c0_11, %c0_12, %c0_13], %13 {strides = array<i32>} : memref<8x4x128xf32, #tpu.memory_space<vmem>>, vector<8x4x128xf32>,
    } else {
    }
    %c0 = arith.constant 0 : index
    %c0_1 = arith.constant 0 : index
    %c0_2 = arith.constant 0 : index
    %3 = vector.load %arg2[%c0, %c0_1, %c0_2] : memref<8x4x256xf32, #tpu.memory_space<vmem>>, vector<8x4x256xf32>
    %c0_3 = arith.constant 0 : index
    %c0_4 = arith.constant 0 : index
    %c0_5 = arith.constant 0 : index
    %4 = vector.load %arg6[%c0_3, %c0_4, %c0_5] : memref<8x4x128xf32, #tpu.memory_space<vmem>>, vector<8x4x128xf32>
    %5 = vector.extract_strided_slice %3 {offsets = [0, 0, 0], sizes = [8, 4, 128], strides = [1, 1, 1]} : vector<8x4x256xf32> to vector<8x4x128xf32>
    %6 = arith.addf %4, %5 : vector<8x4x128xf32>
    %7 = vector.extract_strided_slice %3 {offsets = [0, 0, 128], sizes = [8, 4, 128], strides = [1, 1, 1]} : vector<8x4x256xf32> to vector<8x4x128xf32>
    %8 = arith.addf %6, %7 : vector<8x4x128xf32>
    %c0_6 = arith.constant 0 : index
    %c0_7 = arith.constant 0 : index
    %c0_8 = arith.constant 0 : index
    %9 = vector.load %arg6[%c0_6, %c0_7, %c0_8] : memref<8x4x128xf32, #tpu.memory_space<vmem>>, vector<8x4x128xf32>
    tpu.vector_store %arg6[%c0_6, %c0_7, %c0_8], %8 {strides = array<i32>} : memref<8x4x128xf32, #tpu.memory_space<vmem>>, vector<8x4x128xf32>,
    %c0_i32_9 = arith.constant 0 : i32
    %10 = arith.cmpi eq, %arg1, %c0_i32_9 : i32
    %11 = arith.extui %10 : i1 to i32
    %c0_i32_10 = arith.constant 0 : i32
    %12 = arith.cmpi ne, %11, %c0_i32_10 : i32
    scf.if %12 {
      %c0_11 = arith.constant 0 : index
      %c0_12 = arith.constant 0 : index
      %c0_13 = arith.constant 0 : index
      %13 = vector.load %arg6[%c0_11, %c0_12, %c0_13] : memref<8x4x128xf32, #tpu.memory_space<vmem>>, vector<8x4x128xf32>
      %cst = arith.constant dense<0.000000e+00> : vector<8x4xf32>
      %14 = vector.multi_reduction <add>, %13, %cst [2] : vector<8x4x128xf32> to vector<8x4xf32>
      %cst_14 = arith.constant 3.906250e-03 : f32
      %15 = vector.broadcast %cst_14 : f32 to vector<8x4xf32>
      %16 = arith.mulf %14, %15 : vector<8x4xf32>
      %c0_15 = arith.constant 0 : index
      %c0_16 = arith.constant 0 : index
      %17 = vector.load %arg3[%c0_15, %c0_16] : memref<4x128xf32, #tpu.memory_space<vmem>>, vector<4x128xf32>
      %cst_17 = arith.constant dense<0.000000e+00> : vector<8x128xf32>
      %18 = tpu.matmul %16, %17, %cst_17 {dimension_numbers = #tpu.dot_dimension_numbers<[1], [0], [0], [1], [0, 0, 1, 1], [], []>} : vector<8x4xf32>, vector<4x128xf32>, vector<8x128xf32> -> vector<8x128xf32>
      %c0_18 = arith.constant 0 : index
      %c0_19 = arith.constant 0 : index
      %19 = vector.load %arg4[%c0_18, %c0_19] : memref<1x128xf32, #tpu.memory_space<vmem>>, vector<1x128xf32>
      %20 = vector.broadcast %19 : vector<1x128xf32> to vector<8x128xf32>
      %21 = arith.addf %18, %20 : vector<8x128xf32>
      %c0_20 = arith.constant 0 : index
      %c0_21 = arith.constant 0 : index
      %22 = vector.load %arg5[%c0_20, %c0_21] : memref<8x128xf32, #tpu.memory_space<vmem>>, vector<8x128xf32>
      tpu.vector_store %arg5[%c0_20, %c0_21], %21 {strides = array<i32>} : memref<8x128xf32, #tpu.memory_space<vmem>>, vector<8x128xf32>,
    } else {
    }
    return
  }
  func.func @transform_0(%arg0: i32, %arg1: i32) -> (i32, i32, i32) {
    %c0_i32 = arith.constant 0 : i32
    %c0_i32_0 = arith.constant 0 : i32
    return %arg0, %c0_i32, %arg1 : i32, i32, i32
  }
  func.func @transform_1(%arg0: i32, %arg1: i32) -> (i32, i32) {
    %c0_i32 = arith.constant 0 : i32
    %c0_i32_0 = arith.constant 0 : i32
    %c0_i32_1 = arith.constant 0 : i32
    return %c0_i32, %c0_i32_0 : i32, i32
  }
  func.func @transform_2(%arg0: i32, %arg1: i32) -> (i32, i32) {
    %c0_i32 = arith.constant 0 : i32
    %c0_i32_0 = arith.constant 0 : i32
    %c0_i32_1 = arith.constant 0 : i32
    return %c0_i32, %c0_i32_0 : i32, i32
  }
  func.func @transform_3(%arg0: i32, %arg1: i32) -> (i32, i32) {
    %c0_i32 = arith.constant 0 : i32
    %c0_i32_0 = arith.constant 0 : i32
    return %arg0, %c0_i32 : i32, i32
  }
}

module attributes {stable_mosaic.version = 11 : i64} {
  func.func @_avg_pool_head_kernel(%arg0: i32, %arg1: i32, %arg2: memref<8x4x256xf32, #tpu.memory_space<vmem>>, %arg3: memref<4x128xf32, #tpu.memory_space<vmem>>, %arg4: memref<1x128xf32, #tpu.memory_space<vmem>>, %arg5: memref<8x128xf32, #tpu.memory_space<vmem>>, %arg6: memref<8x4x128xf32, #tpu.memory_space<vmem>>) attributes {dimension_semantics = [#tpu.dimension_semantics<parallel>, #tpu.dimension_semantics<arbitrary>], iteration_bounds = array<i64: 1, 1>, scalar_prefetch = 0 : i64, scratch_operands = 1 : i64, tpu.core_type = #tpu.core_type<tc>, window_params = [{transform_indices = @transform_0, window_bounds = array<i64: 8, 4, 256>}, {pipeline_mode = #tpu.pipeline_mode<synchronous>, transform_indices = @transform_1, window_bounds = array<i64: 4, 128>}, {pipeline_mode = #tpu.pipeline_mode<synchronous>, transform_indices = @transform_2, window_bounds = array<i64: 1, 128>}, {transform_indices = @transform_3, window_bounds = array<i64: 8, 128>}]} {
    %c0_i32 = arith.constant 0 : i32
    %0 = arith.cmpi eq, %arg1, %c0_i32 : i32
    %1 = arith.extui %0 : i1 to i32
    %c0_i32_0 = arith.constant 0 : i32
    %2 = arith.cmpi ne, %1, %c0_i32_0 : i32
    scf.if %2 {
      %cst = arith.constant 0.000000e+00 : f32
      %13 = vector.broadcast %cst : f32 to vector<8x4x128xf32>
      %c0_11 = arith.constant 0 : index
      %c0_12 = arith.constant 0 : index
      %c0_13 = arith.constant 0 : index
      %14 = vector.load %arg6[%c0_11, %c0_12, %c0_13] : memref<8x4x128xf32, #tpu.memory_space<vmem>>, vector<8x4x128xf32>
      tpu.vector_store %arg6[%c0_11, %c0_12, %c0_13], %13 {strides = array<i32>} : memref<8x4x128xf32, #tpu.memory_space<vmem>>, vector<8x4x128xf32>,
    } else {
    }
    %c0 = arith.constant 0 : index
    %c0_1 = arith.constant 0 : index
    %c0_2 = arith.constant 0 : index
    %3 = vector.load %arg2[%c0, %c0_1, %c0_2] : memref<8x4x256xf32, #tpu.memory_space<vmem>>, vector<8x4x256xf32>
    %c0_3 = arith.constant 0 : index
    %c0_4 = arith.constant 0 : index
    %c0_5 = arith.constant 0 : index
    %4 = vector.load %arg6[%c0_3, %c0_4, %c0_5] : memref<8x4x128xf32, #tpu.memory_space<vmem>>, vector<8x4x128xf32>
    %5 = vector.extract_strided_slice %3 {offsets = [0, 0, 0], sizes = [8, 4, 128], strides = [1, 1, 1]} : vector<8x4x256xf32> to vector<8x4x128xf32>
    %6 = arith.addf %4, %5 : vector<8x4x128xf32>
    %7 = vector.extract_strided_slice %3 {offsets = [0, 0, 128], sizes = [8, 4, 128], strides = [1, 1, 1]} : vector<8x4x256xf32> to vector<8x4x128xf32>
    %8 = arith.addf %6, %7 : vector<8x4x128xf32>
    %c0_6 = arith.constant 0 : index
    %c0_7 = arith.constant 0 : index
    %c0_8 = arith.constant 0 : index
    %9 = vector.load %arg6[%c0_6, %c0_7, %c0_8] : memref<8x4x128xf32, #tpu.memory_space<vmem>>, vector<8x4x128xf32>
    tpu.vector_store %arg6[%c0_6, %c0_7, %c0_8], %8 {strides = array<i32>} : memref<8x4x128xf32, #tpu.memory_space<vmem>>, vector<8x4x128xf32>,
    %c0_i32_9 = arith.constant 0 : i32
    %10 = arith.cmpi eq, %arg1, %c0_i32_9 : i32
    %11 = arith.extui %10 : i1 to i32
    %c0_i32_10 = arith.constant 0 : i32
    %12 = arith.cmpi ne, %11, %c0_i32_10 : i32
    scf.if %12 {
      %c0_11 = arith.constant 0 : index
      %c0_12 = arith.constant 0 : index
      %c0_13 = arith.constant 0 : index
      %13 = vector.load %arg6[%c0_11, %c0_12, %c0_13] : memref<8x4x128xf32, #tpu.memory_space<vmem>>, vector<8x4x128xf32>
      %cst = arith.constant dense<0.000000e+00> : vector<8x4xf32>
      %14 = vector.multi_reduction <add>, %13, %cst [2] : vector<8x4x128xf32> to vector<8x4xf32>
      %cst_14 = arith.constant 3.906250e-03 : f32
      %15 = vector.broadcast %cst_14 : f32 to vector<8x4xf32>
      %16 = arith.mulf %14, %15 : vector<8x4xf32>
      %c0_15 = arith.constant 0 : index
      %c0_16 = arith.constant 0 : index
      %17 = vector.load %arg3[%c0_15, %c0_16] : memref<4x128xf32, #tpu.memory_space<vmem>>, vector<4x128xf32>
      %cst_17 = arith.constant dense<0.000000e+00> : vector<8x128xf32>
      %18 = tpu.matmul %16, %17, %cst_17 {dimension_numbers = #tpu.dot_dimension_numbers<[1], [0], [0], [1], [0, 0, 1, 1], [], []>} : vector<8x4xf32>, vector<4x128xf32>, vector<8x128xf32> -> vector<8x128xf32>
      %c0_18 = arith.constant 0 : index
      %c0_19 = arith.constant 0 : index
      %19 = vector.load %arg4[%c0_18, %c0_19] : memref<1x128xf32, #tpu.memory_space<vmem>>, vector<1x128xf32>
      %20 = vector.broadcast %19 : vector<1x128xf32> to vector<8x128xf32>
      %21 = arith.addf %18, %20 : vector<8x128xf32>
      %c0_20 = arith.constant 0 : index
      %c0_21 = arith.constant 0 : index
      %22 = vector.load %arg5[%c0_20, %c0_21] : memref<8x128xf32, #tpu.memory_space<vmem>>, vector<8x128xf32>
      tpu.vector_store %arg5[%c0_20, %c0_21], %21 {strides = array<i32>} : memref<8x128xf32, #tpu.memory_space<vmem>>, vector<8x128xf32>,
    } else {
    }
    return
  }
  func.func @transform_0(%arg0: i32, %arg1: i32) -> (i32, i32, i32) {
    %c0_i32 = arith.constant 0 : i32
    %c0_i32_0 = arith.constant 0 : i32
    return %arg0, %c0_i32, %arg1 : i32, i32, i32
  }
  func.func @transform_1(%arg0: i32, %arg1: i32) -> (i32, i32) {
    %c0_i32 = arith.constant 0 : i32
    %c0_i32_0 = arith.constant 0 : i32
    %c0_i32_1 = arith.constant 0 : i32
    return %c0_i32, %c0_i32_0 : i32, i32
  }
  func.func @transform_2(%arg0: i32, %arg1: i32) -> (i32, i32) {
    %c0_i32 = arith.constant 0 : i32
    %c0_i32_0 = arith.constant 0 : i32
    %c0_i32_1 = arith.constant 0 : i32
    return %c0_i32, %c0_i32_0 : i32, i32
  }
  func.func @transform_3(%arg0: i32, %arg1: i32) -> (i32, i32) {
    %c0_i32 = arith.constant 0 : i32
    %c0_i32_0 = arith.constant 0 : i32
    return %arg0, %c0_i32 : i32, i32
  }
}

</mosaic_0001>

<llo_original>
// kernel: tpu_custom_call.1
$region0: #{tpu_custom_call.1}
  #allocation0 [shape = 'u32[]', space=smem, size = 0x4, offset = 0x4, fixed_abs, tag = 'smem constant byte address 0x4 - core index']
  #allocation1 [shape = 'u32[72,128]{1,0:T(1,128)}', space=vmem, size = 0x9000, scoped, tag = 'internal scratch']
  #allocation2 [shape = 'f32[8,4,128]{2,1,0:T(4,128)}', space=vmem, size = 0x4000, scoped, tag = 'scratch operand']
  %s0 = inlined_call_operand.hbm [shape: f32[2,4,256], index: 0, kind: input, shape index: {}]
  %s1 = inlined_call_operand.hbm [shape: f32[4,128], index: 1, kind: input, shape index: {}]
  %s2 = inlined_call_operand.vmem [shape: f32[1,128], index: 2, kind: input, shape index: {}]
  %s3 = inlined_call_operand.hbm [shape: f32[2,128], index: 3, kind: output, shape index: {}]
  %s4 = sld [smem:[#allocation0]]
  $region38: #{tpu_custom_call.1} parent=0
    _
  %s6 = ssub.s32 1, %s4
  %s7 = scalar_select 0, %s6, %s4
  $region1: #{tpu_custom_call.1} parent=0
    #allocation3 [shape = 'u8[32768]{0}', space=vmem, size = 0x8000, scoped, tag = 'input window, operand 0, single buffered']
    #allocation4 [shape = 's32[1]{0}', space=sflag, size = 0x4, scoped, tag = 'scoped memory for tpu_custom_call.1']
    #allocation5 [shape = 's32[1]{0}', space=sflag, size = 0x4, scoped, tag = 'scoped memory for tpu_custom_call.1']
    #allocation6 [shape = 'u8[2048]{0}', space=vmem, size = 0x800, scoped, tag = 'input window, operand 1, single buffered']
    #allocation7 [shape = 's32[1]{0}', space=sflag, size = 0x4, scoped, tag = 'scoped memory for tpu_custom_call.1']
    #allocation8 [shape = 'u8[4096]{0}', space=vmem, size = 0x1000, scoped, tag = 'output window, operand 0, single buffered']
    %8 = vsyncpa [#allocation4], 0
    %9 = vsyncpa [#allocation7], 0
    %10 = vsyncpa [#allocation5], 0
    // Predicated region
    $region2: #{tpu_custom_call.1} parent=1 // pred_check
      _
    $region3: #{tpu_custom_call.1} parent=1 // pred_check_branch
      %12 = sbr.rel (0) target = $region5
    $region4: #{tpu_custom_call.1} parent=1 // pred_region
      %14 = vsyncadd [#allocation4], 768
      %s15 = sshll.u32 %s0, 4
      %s16 = int_to_ptr.hbm [resolvable:$true] %s15
      %s17 = sshll.u32 [#allocation3], 4
      %s18 = int_to_ptr.vmem [resolvable:$true] %s17
      %23 = dma.hbm_to_vmem [thread:$0]  %s16, 256, %s18, [#allocation4], 128, 128, 8
    $region5: #{tpu_custom_call.1} parent=1 // pred_fallthru
      _
    // Predicated region
    $region6: #{tpu_custom_call.1} parent=1 // pred_check
      _
    $region7: #{tpu_custom_call.1} parent=1 // pred_check_branch
      %25 = sbr.rel (0) target = $region9
    $region8: #{tpu_custom_call.1} parent=1 // pred_region
      %27 = vsyncadd [#allocation7], 0
      %s29 = sshll.u32 %s1, 4
      %s30 = int_to_ptr.hbm [resolvable:$true] %s29
      %s31 = sshll.u32 [#allocation6], 4
      %s32 = int_to_ptr.vmem [resolvable:$true] %s31
      %34 = dma.hbm_to_vmem [thread:$0]  %s30, 64, %s32, [#allocation7]
    $region9: #{tpu_custom_call.1} parent=1 // pred_fallthru
      _
    // Predicated region
    $region10: #{tpu_custom_call.1} parent=1 // pred_check
      _
    $region11: #{tpu_custom_call.1} parent=1 // pred_check_branch
      %36 = sbr.rel (0) target = $region13
    $region12: #{tpu_custom_call.1} parent=1 // pred_region
      _
    $region13: #{tpu_custom_call.1} parent=1 // pred_fallthru
      _
    // Predicated region
    $region14: #{tpu_custom_call.1} parent=1 // pred_check
      _
    $region15: #{tpu_custom_call.1} parent=1 // pred_check_branch
      %38 = sbr.rel (0) target = $region17
    $region16: #{tpu_custom_call.1} parent=1 // pred_region
      %40 = dma.done [#allocation4], 1024
    $region17: #{tpu_custom_call.1} parent=1 // pred_fallthru
      _
    // Predicated region
    $region18: #{tpu_custom_call.1} parent=1 // pred_check
      _
    $region19: #{tpu_custom_call.1} parent=1 // pred_check_branch
      %42 = sbr.rel (0) target = $region21
    $region20: #{tpu_custom_call.1} parent=1 // pred_region
      %44 = dma.done [#allocation7], 64
    $region21: #{tpu_custom_call.1} parent=1 // pred_fallthru
      _
    %p45 = scmp.eq.s32.totalorder 0, 0
    // Predicated region
    $region22: #{tpu_custom_call.1} parent=1 // pred_check
      %p46 = pneg %p45
    $region23: #{tpu_custom_call.1} parent=1 // pred_check_branch
      %48 = sbr.rel (%p46) target = $region25
    $region24: #{tpu_custom_call.1} parent=1 // pred_region
      %49 = vst [vmem:[#allocation2] sm:$0xf] 0.0
      %50 = vst [vmem:[#allocation2 + $0x4] sm:$0xf] 0.0
      %51 = vst [vmem:[#allocation2 + $0x8] sm:$0xf] 0.0
      %52 = vst [vmem:[#allocation2 + $0xc] sm:$0xf] 0.0
      %53 = vst [vmem:[#allocation2 + $0x10] sm:$0xf] 0.0
      %54 = vst [vmem:[#allocation2 + $0x14] sm:$0xf] 0.0
      %55 = vst [vmem:[#allocation2 + $0x18] sm:$0xf] 0.0
      %56 = vst [vmem:[#allocation2 + $0x1c] sm:$0xf] 0.0
    $region25: #{tpu_custom_call.1} parent=1 // pred_fallthru
      _
    %v57 = vld [vmem:[#allocation3] sm:$0xff]
    %v58 = vld [vmem:[#allocation3 + $0x8] sm:$0xff]
    %v59 = vld [vmem:[#allocation3 + $0x10] sm:$0xff]
    %v60 = vld [vmem:[#allocation3 + $0x18] sm:$0xff]
    %v61 = vld [vmem:[#allocation3 + $0x20] sm:$0xff]
    %v62 = vld [vmem:[#allocation3 + $0x28] sm:$0xff]
    %v63 = vld [vmem:[#allocation3 + $0x30] sm:$0xff]
    %v64 = vld [vmem:[#allocation3 + $0x38] sm:$0xff]
    %v65 = vld [vmem:[#allocation2] sm:$0xf]
    %v66 = vld [vmem:[#allocation2 + $0x4] sm:$0xf]
    %v67 = vld [vmem:[#allocation2 + $0x8] sm:$0xf]
    %v68 = vld [vmem:[#allocation2 + $0xc] sm:$0xf]
    %v69 = vld [vmem:[#allocation2 + $0x10] sm:$0xf]
    %v70 = vld [vmem:[#allocation2 + $0x14] sm:$0xf]
    %v71 = vld [vmem:[#allocation2 + $0x18] sm:$0xf]
    %v72 = vld [vmem:[#allocation2 + $0x1c] sm:$0xf]
    %v73 = vadd.f32 %v65, %v57
    %v74 = vadd.f32 %v66, %v58
    %v75 = vadd.f32 %v67, %v59
    %v76 = vadd.f32 %v68, %v60
    %v77 = vadd.f32 %v69, %v61
    %v78 = vadd.f32 %v70, %v62
    %v79 = vadd.f32 %v71, %v63
    %v80 = vadd.f32 %v72, %v64
    %89 = vst [vmem:[#allocation1] ss:$2 sm:$0xff] %v57
    %v90 = vld.sshfl [vmem:[#allocation1 + $0x8] sm:$0xff pattern:$0x75316420]
    %s91 = scalar_lea.vmem [#allocation1], 16
    %92 = vst [vmem:[%s91] ss:$2 sm:$0xff] %v58
    %v93 = vld.sshfl [vmem:[#allocation1 + $0x18] sm:$0xff pattern:$0x75316420]
    %s94 = scalar_lea.vmem [#allocation1], 32
    %95 = vst [vmem:[%s94] ss:$2 sm:$0xff] %v59
    %v96 = vld.sshfl [vmem:[#allocation1 + $0x28] sm:$0xff pattern:$0x75316420]
    %s97 = scalar_lea.vmem [#allocation1], 48
    %98 = vst [vmem:[%s97] ss:$2 sm:$0xff] %v60
    %v99 = vld.sshfl [vmem:[#allocation1 + $0x38] sm:$0xff pattern:$0x75316420]
    %100 = vst [vmem:[#allocation1] ss:$2 sm:$0xff] %v61
    %v101 = vld.sshfl [vmem:[#allocation1 + $0x8] sm:$0xff pattern:$0x75316420]
    %102 = vst [vmem:[%s91] ss:$2 sm:$0xff] %v62
    %v103 = vld.sshfl [vmem:[#allocation1 + $0x18] sm:$0xff pattern:$0x75316420]
    %104 = vst [vmem:[%s94] ss:$2 sm:$0xff] %v63
    %v105 = vld.sshfl [vmem:[#allocation1 + $0x28] sm:$0xff pattern:$0x75316420]
    %106 = vst [vmem:[%s97] ss:$2 sm:$0xff] %v64
    %v107 = vld.sshfl [vmem:[#allocation1 + $0x38] sm:$0xff pattern:$0x75316420]
    %v116 = vadd.f32 %v73, %v90
    %v117 = vadd.f32 %v74, %v93
    %v118 = vadd.f32 %v75, %v96
    %v119 = vadd.f32 %v76, %v99
    %v120 = vadd.f32 %v77, %v101
    %v121 = vadd.f32 %v78, %v103
    %v122 = vadd.f32 %v79, %v105
    %v123 = vadd.f32 %v80, %v107
    %124 = vst [vmem:[#allocation2] sm:$0xf] %v116
    %125 = vst [vmem:[#allocation2 + $0x4] sm:$0xf] %v117
    %126 = vst [vmem:[#allocation2 + $0x8] sm:$0xf] %v118
    %127 = vst [vmem:[#allocation2 + $0xc] sm:$0xf] %v119
    %128 = vst [vmem:[#allocation2 + $0x10] sm:$0xf] %v120
    %129 = vst [vmem:[#allocation2 + $0x14] sm:$0xf] %v121
    %130 = vst [vmem:[#allocation2 + $0x18] sm:$0xf] %v122
    %131 = vst [vmem:[#allocation2 + $0x1c] sm:$0xf] %v123
    // Predicated region
    $region26: #{tpu_custom_call.1} parent=1 // pred_check
      %p132 = pneg %p45
    $region27: #{tpu_custom_call.1} parent=1 // pred_check_branch
      %134 = sbr.rel (%p132) target = $region29
    $region28: #{tpu_custom_call.1} parent=1 // pred_region
      %v135 = vld [vmem:[#allocation2] sm:$0xf]
      %v136 = vld [vmem:[#allocation2 + $0x4] sm:$0xf]
      %v137 = vld [vmem:[#allocation2 + $0x8] sm:$0xf]
      %v138 = vld [vmem:[#allocation2 + $0xc] sm:$0xf]
      %v139 = vld [vmem:[#allocation2 + $0x10] sm:$0xf]
      %v140 = vld [vmem:[#allocation2 + $0x14] sm:$0xf]
      %v141 = vld [vmem:[#allocation2 + $0x18] sm:$0xf]
      %v142 = vld [vmem:[#allocation2 + $0x1c] sm:$0xf]
      %vm143 = vcmask 1043456
      %v144 = vsel %vm143, %v135, 0.0
      %145 = vadd.xlane.f32.xlu0 %v144
      %v146 = vpop.xlane.xlu0 %145
      %v147 = vsel %vm143, %v136, 0.0
      %148 = vadd.xlane.f32.xlu0 %v147
      %v149 = vpop.xlane.xlu0 %148
      %v150 = vsel %vm143, %v137, 0.0
      %151 = vadd.xlane.f32.xlu0 %v150
      %v152 = vpop.xlane.xlu0 %151
      %v153 = vsel %vm143, %v138, 0.0
      %154 = vadd.xlane.f32.xlu0 %v153
      %v155 = vpop.xlane.xlu0 %154
      %v156 = vsel %vm143, %v139, 0.0
      %157 = vadd.xlane.f32.xlu0 %v156
      %v158 = vpop.xlane.xlu0 %157
      %v159 = vsel %vm143, %v140, 0.0
      %160 = vadd.xlane.f32.xlu0 %v159
      %v161 = vpop.xlane.xlu0 %160
      %v162 = vsel %vm143, %v141, 0.0
      %163 = vadd.xlane.f32.xlu0 %v162
      %v164 = vpop.xlane.xlu0 %163
      %v165 = vsel %vm143, %v142, 0.0
      %166 = vadd.xlane.f32.xlu0 %v165
      %v167 = vpop.xlane.xlu0 %166
      %v168 = vmul.f32 %v146, 0.00390625
      %v169 = vmul.f32 %v149, 0.00390625
      %v170 = vmul.f32 %v152, 0.00390625
      %v171 = vmul.f32 %v155, 0.00390625
      %v172 = vmul.f32 %v158, 0.00390625
      %v173 = vmul.f32 %v161, 0.00390625
      %v174 = vmul.f32 %v164, 0.00390625
      %v175 = vmul.f32 %v167, 0.00390625
      %v176 = vld [vmem:[#allocation6] sm:$0xf]
      %v177 = vld [vmem:[%s2] sm:$0x1]
      %v179 = vperm.slane %v177, 0
      %v189 = vlaneseq
      %v190 = vand.u32 %v189, 127
      %v191 = vperm.slane %v168, %v190
      %v192 = vperm.slane %v169, %v190
      %v193 = vperm.slane %v170, %v190
      %v194 = vperm.slane %v171, %v190
      %v195 = vperm.slane %v172, %v190
      %v196 = vperm.slane %v173, %v190
      %v197 = vperm.slane %v174, %v190
      %v198 = vperm.slane %v175, %v190
      %vm199 = vcmask 1041409
      %v200 = vsel %vm199, %v192, %v191
      %vm201 = vcmask 1042434
      %v202 = vsel %vm201, %v193, %v200
      %vm203 = vcmask 1043459
      %v204 = vsel %vm203, %v194, %v202
      %vm205 = vcmask 1044484
      %v206 = vsel %vm205, %v195, %v204
      %vm207 = vcmask 1045509
      %v208 = vsel %vm207, %v196, %v206
      %vm209 = vcmask 1046534
      %v210 = vsel %vm209, %v197, %v208
      %vm211 = vcmask 1047559
      %v212 = vsel %vm211, %v198, %v210
      %vm213 = vcmask 31744
      %v214 = vsel %vm213, %v212, 0
      %v217 = vsel %vm143, %v176, 0
      %219 = vmatpush.msra.mxu0 0.0
      %220 = vmatpush.msra.mxu0 0.0
      %221 = vmatpush.msra.mxu0 0.0
      %222 = vmatpush.msra.mxu0 0.0
      %223 = vmatpush.msra.mxu0 0.0
      %224 = vmatpush.msra.mxu0 0.0
      %225 = vmatpush.msra.mxu0 0.0
      %226 = vmatpush.msra.mxu0 0.0
      %227 = vmatpush.msra.mxu0 0.0
      %228 = vmatpush.msra.mxu0 0.0
      %229 = vmatpush.msra.mxu0 0.0
      %230 = vmatpush.msra.mxu0 0.0
      %231 = vmatpush.msra.mxu0 0.0
      %232 = vmatpush.msra.mxu0 0.0
      %233 = vmatpush.msra.mxu0 0.0
      %234 = vmatpush.msra.mxu0 %v217
      %235 = vmatmul.f32.gmra.mxu0 %v214
      %v236 = vpop.f32.mrf.mxu0
      %v237 = vadd.f32 %v179, %v236
      %238 = vdwg.mxu0
      %239 = vst [vmem:[#allocation8] sm:$0xff] %v237
    $region29: #{tpu_custom_call.1} parent=1 // pred_fallthru
      _
    // Predicated region
    $region30: #{tpu_custom_call.1} parent=1 // pred_check
      _
    $region31: #{tpu_custom_call.1} parent=1 // pred_check_branch
      %241 = sbr.rel (0) target = $region33
    $region32: #{tpu_custom_call.1} parent=1 // pred_region
      %243 = vsyncadd [#allocation5], 96
      %s244 = sshll.u32 [#allocation8], 4
      %s245 = int_to_ptr.vmem [resolvable:$true] %s244
      %s246 = sshll.u32 %s3, 4
      %s247 = int_to_ptr.hbm [resolvable:$true] %s246
      %252 = dma.vmem_to_hbm [thread:$0]  %s245, 32, %s247, [#allocation5], 32, 32, 2
    $region33: #{tpu_custom_call.1} parent=1 // pred_fallthru
      _
    // Predicated region
    $region34: #{tpu_custom_call.1} parent=1 // pred_check
      _
    $region35: #{tpu_custom_call.1} parent=1 // pred_check_branch
      %254 = sbr.rel (0) target = $region37
    $region36: #{tpu_custom_call.1} parent=1 // pred_region
      %256 = dma.done [#allocation5], 128
    $region37: #{tpu_custom_call.1} parent=1 // pred_fallthru
      _
    %257 = vsyncpa [#allocation4], 1
    %258 = vsyncpa [#allocation7], 1
    %259 = vsyncpa [#allocation5], 1

// kernel: tpu_custom_call.1
$region0: #{tpu_custom_call.1}
  #allocation0 [shape = 'u32[]', space=smem, size = 0x4, offset = 0x4, fixed_abs, tag = 'smem constant byte address 0x4 - core index']
  #allocation1 [shape = 'u32[72,128]{1,0:T(1,128)}', space=vmem, size = 0x9000, scoped, tag = 'internal scratch']
  #allocation2 [shape = 'f32[8,4,128]{2,1,0:T(4,128)}', space=vmem, size = 0x4000, scoped, tag = 'scratch operand']
  %s0 = inlined_call_operand.hbm [shape: f32[2,4,256], index: 0, kind: input, shape index: {}]
  %s1 = inlined_call_operand.hbm [shape: f32[4,128], index: 1, kind: input, shape index: {}]
  %s2 = inlined_call_operand.vmem [shape: f32[1,128], index: 2, kind: input, shape index: {}]
  %s3 = inlined_call_operand.hbm [shape: f32[2,128], index: 3, kind: output, shape index: {}]
  %s4 = sld [smem:[#allocation0]]
  $region38: #{tpu_custom_call.1} parent=0
    _
  %s6 = ssub.s32 1, %s4
  %s7 = scalar_select 0, %s6, %s4
  $region1: #{tpu_custom_call.1} parent=0
    #allocation3 [shape = 'u8[32768]{0}', space=vmem, size = 0x8000, scoped, tag = 'input window, operand 0, single buffered']
    #allocation4 [shape = 's32[1]{0}', space=sflag, size = 0x4, scoped, tag = 'scoped memory for tpu_custom_call.1']
    #allocation5 [shape = 's32[1]{0}', space=sflag, size = 0x4, scoped, tag = 'scoped memory for tpu_custom_call.1']
    #allocation6 [shape = 'u8[2048]{0}', space=vmem, size = 0x800, scoped, tag = 'input window, operand 1, single buffered']
    #allocation7 [shape = 's32[1]{0}', space=sflag, size = 0x4, scoped, tag = 'scoped memory for tpu_custom_call.1']
    #allocation8 [shape = 'u8[4096]{0}', space=vmem, size = 0x1000, scoped, tag = 'output window, operand 0, single buffered']
    %8 = vsyncpa [#allocation4], 0
    %9 = vsyncpa [#allocation7], 0
    %10 = vsyncpa [#allocation5], 0
    // Predicated region
    $region2: #{tpu_custom_call.1} parent=1 // pred_check
      _
    $region3: #{tpu_custom_call.1} parent=1 // pred_check_branch
      %12 = sbr.rel (0) target = $region5
    $region4: #{tpu_custom_call.1} parent=1 // pred_region
      %14 = vsyncadd [#allocation4], 768
      %s15 = sshll.u32 %s0, 4
      %s16 = int_to_ptr.hbm [resolvable:$true] %s15
      %s17 = sshll.u32 [#allocation3], 4
      %s18 = int_to_ptr.vmem [resolvable:$true] %s17
      %23 = dma.hbm_to_vmem [thread:$0]  %s16, 256, %s18, [#allocation4], 128, 128, 8
    $region5: #{tpu_custom_call.1} parent=1 // pred_fallthru
      _
    // Predicated region
    $region6: #{tpu_custom_call.1} parent=1 // pred_check
      _
    $region7: #{tpu_custom_call.1} parent=1 // pred_check_branch
      %25 = sbr.rel (0) target = $region9
    $region8: #{tpu_custom_call.1} parent=1 // pred_region
      %27 = vsyncadd [#allocation7], 0
      %s29 = sshll.u32 %s1, 4
      %s30 = int_to_ptr.hbm [resolvable:$true] %s29
      %s31 = sshll.u32 [#allocation6], 4
      %s32 = int_to_ptr.vmem [resolvable:$true] %s31
      %34 = dma.hbm_to_vmem [thread:$0]  %s30, 64, %s32, [#allocation7]
    $region9: #{tpu_custom_call.1} parent=1 // pred_fallthru
      _
    // Predicated region
    $region10: #{tpu_custom_call.1} parent=1 // pred_check
      _
    $region11: #{tpu_custom_call.1} parent=1 // pred_check_branch
      %36 = sbr.rel (0) target = $region13
    $region12: #{tpu_custom_call.1} parent=1 // pred_region
      _
    $region13: #{tpu_custom_call.1} parent=1 // pred_fallthru
      _
    // Predicated region
    $region14: #{tpu_custom_call.1} parent=1 // pred_check
      _
    $region15: #{tpu_custom_call.1} parent=1 // pred_check_branch
      %38 = sbr.rel (0) target = $region17
    $region16: #{tpu_custom_call.1} parent=1 // pred_region
      %40 = dma.done [#allocation4], 1024
    $region17: #{tpu_custom_call.1} parent=1 // pred_fallthru
      _
    // Predicated region
    $region18: #{tpu_custom_call.1} parent=1 // pred_check
      _
    $region19: #{tpu_custom_call.1} parent=1 // pred_check_branch
      %42 = sbr.rel (0) target = $region21
    $region20: #{tpu_custom_call.1} parent=1 // pred_region
      %44 = dma.done [#allocation7], 64
    $region21: #{tpu_custom_call.1} parent=1 // pred_fallthru
      _
    %p45 = scmp.eq.s32.totalorder 0, 0
    // Predicated region
    $region22: #{tpu_custom_call.1} parent=1 // pred_check
      %p46 = pneg %p45
    $region23: #{tpu_custom_call.1} parent=1 // pred_check_branch
      %48 = sbr.rel (%p46) target = $region25
    $region24: #{tpu_custom_call.1} parent=1 // pred_region
      %49 = vst [vmem:[#allocation2] sm:$0xf] 0.0
      %50 = vst [vmem:[#allocation2 + $0x4] sm:$0xf] 0.0
      %51 = vst [vmem:[#allocation2 + $0x8] sm:$0xf] 0.0
      %52 = vst [vmem:[#allocation2 + $0xc] sm:$0xf] 0.0
      %53 = vst [vmem:[#allocation2 + $0x10] sm:$0xf] 0.0
      %54 = vst [vmem:[#allocation2 + $0x14] sm:$0xf] 0.0
      %55 = vst [vmem:[#allocation2 + $0x18] sm:$0xf] 0.0
      %56 = vst [vmem:[#allocation2 + $0x1c] sm:$0xf] 0.0
    $region25: #{tpu_custom_call.1} parent=1 // pred_fallthru
      _
    %v57 = vld [vmem:[#allocation3] sm:$0xff]
    %v58 = vld [vmem:[#allocation3 + $0x8] sm:$0xff]
    %v59 = vld [vmem:[#allocation3 + $0x10] sm:$0xff]
    %v60 = vld [vmem:[#allocation3 + $0x18] sm:$0xff]
    %v61 = vld [vmem:[#allocation3 + $0x20] sm:$0xff]
    %v62 = vld [vmem:[#allocation3 + $0x28] sm:$0xff]
    %v63 = vld [vmem:[#allocation3 + $0x30] sm:$0xff]
    %v64 = vld [vmem:[#allocation3 + $0x38] sm:$0xff]
    %v65 = vld [vmem:[#allocation2] sm:$0xf]
    %v66 = vld [vmem:[#allocation2 + $0x4] sm:$0xf]
    %v67 = vld [vmem:[#allocation2 + $0x8] sm:$0xf]
    %v68 = vld [vmem:[#allocation2 + $0xc] sm:$0xf]
    %v69 = vld [vmem:[#allocation2 + $0x10] sm:$0xf]
    %v70 = vld [vmem:[#allocation2 + $0x14] sm:$0xf]
    %v71 = vld [vmem:[#allocation2 + $0x18] sm:$0xf]
    %v72 = vld [vmem:[#allocation2 + $0x1c] sm:$0xf]
    %v73 = vadd.f32 %v65, %v57
    %v74 = vadd.f32 %v66, %v58
    %v75 = vadd.f32 %v67, %v59
    %v76 = vadd.f32 %v68, %v60
    %v77 = vadd.f32 %v69, %v61
    %v78 = vadd.f32 %v70, %v62
    %v79 = vadd.f32 %v71, %v63
    %v80 = vadd.f32 %v72, %v64
    %89 = vst [vmem:[#allocation1] ss:$2 sm:$0xff] %v57
    %v90 = vld.sshfl [vmem:[#allocation1 + $0x8] sm:$0xff pattern:$0x75316420]
    %s91 = scalar_lea.vmem [#allocation1], 16
    %92 = vst [vmem:[%s91] ss:$2 sm:$0xff] %v58
    %v93 = vld.sshfl [vmem:[#allocation1 + $0x18] sm:$0xff pattern:$0x75316420]
    %s94 = scalar_lea.vmem [#allocation1], 32
    %95 = vst [vmem:[%s94] ss:$2 sm:$0xff] %v59
    %v96 = vld.sshfl [vmem:[#allocation1 + $0x28] sm:$0xff pattern:$0x75316420]
    %s97 = scalar_lea.vmem [#allocation1], 48
    %98 = vst [vmem:[%s97] ss:$2 sm:$0xff] %v60
    %v99 = vld.sshfl [vmem:[#allocation1 + $0x38] sm:$0xff pattern:$0x75316420]
    %100 = vst [vmem:[#allocation1] ss:$2 sm:$0xff] %v61
    %v101 = vld.sshfl [vmem:[#allocation1 + $0x8] sm:$0xff pattern:$0x75316420]
    %102 = vst [vmem:[%s91] ss:$2 sm:$0xff] %v62
    %v103 = vld.sshfl [vmem:[#allocation1 + $0x18] sm:$0xff pattern:$0x75316420]
    %104 = vst [vmem:[%s94] ss:$2 sm:$0xff] %v63
    %v105 = vld.sshfl [vmem:[#allocation1 + $0x28] sm:$0xff pattern:$0x75316420]
    %106 = vst [vmem:[%s97] ss:$2 sm:$0xff] %v64
    %v107 = vld.sshfl [vmem:[#allocation1 + $0x38] sm:$0xff pattern:$0x75316420]
    %v116 = vadd.f32 %v73, %v90
    %v117 = vadd.f32 %v74, %v93
    %v118 = vadd.f32 %v75, %v96
    %v119 = vadd.f32 %v76, %v99
    %v120 = vadd.f32 %v77, %v101
    %v121 = vadd.f32 %v78, %v103
    %v122 = vadd.f32 %v79, %v105
    %v123 = vadd.f32 %v80, %v107
    %124 = vst [vmem:[#allocation2] sm:$0xf] %v116
    %125 = vst [vmem:[#allocation2 + $0x4] sm:$0xf] %v117
    %126 = vst [vmem:[#allocation2 + $0x8] sm:$0xf] %v118
    %127 = vst [vmem:[#allocation2 + $0xc] sm:$0xf] %v119
    %128 = vst [vmem:[#allocation2 + $0x10] sm:$0xf] %v120
    %129 = vst [vmem:[#allocation2 + $0x14] sm:$0xf] %v121
    %130 = vst [vmem:[#allocation2 + $0x18] sm:$0xf] %v122
    %131 = vst [vmem:[#allocation2 + $0x1c] sm:$0xf] %v123
    // Predicated region
    $region26: #{tpu_custom_call.1} parent=1 // pred_check
      %p132 = pneg %p45
    $region27: #{tpu_custom_call.1} parent=1 // pred_check_branch
      %134 = sbr.rel (%p132) target = $region29
    $region28: #{tpu_custom_call.1} parent=1 // pred_region
      %v135 = vld [vmem:[#allocation2] sm:$0xf]
      %v136 = vld [vmem:[#allocation2 + $0x4] sm:$0xf]
      %v137 = vld [vmem:[#allocation2 + $0x8] sm:$0xf]
      %v138 = vld [vmem:[#allocation2 + $0xc] sm:$0xf]
      %v139 = vld [vmem:[#allocation2 + $0x10] sm:$0xf]
      %v140 = vld [vmem:[#allocation2 + $0x14] sm:$0xf]
      %v141 = vld [vmem:[#allocation2 + $0x18] sm:$0xf]
      %v142 = vld [vmem:[#allocation2 + $0x1c] sm:$0xf]
      %vm143 = vcmask 1043456
      %v144 = vsel %vm143, %v135, 0.0
      %145 = vadd.xlane.f32.xlu0 %v144
      %v146 = vpop.xlane.xlu0 %145
      %v147 = vsel %vm143, %v136, 0.0
      %148 = vadd.xlane.f32.xlu0 %v147
      %v149 = vpop.xlane.xlu0 %148
      %v150 = vsel %vm143, %v137, 0.0
      %151 = vadd.xlane.f32.xlu0 %v150
      %v152 = vpop.xlane.xlu0 %151
      %v153 = vsel %vm143, %v138, 0.0
      %154 = vadd.xlane.f32.xlu0 %v153
      %v155 = vpop.xlane.xlu0 %154
      %v156 = vsel %vm143, %v139, 0.0
      %157 = vadd.xlane.f32.xlu0 %v156
      %v158 = vpop.xlane.xlu0 %157
      %v159 = vsel %vm143, %v140, 0.0
      %160 = vadd.xlane.f32.xlu0 %v159
      %v161 = vpop.xlane.xlu0 %160
      %v162 = vsel %vm143, %v141, 0.0
      %163 = vadd.xlane.f32.xlu0 %v162
      %v164 = vpop.xlane.xlu0 %163
      %v165 = vsel %vm143, %v142, 0.0
      %166 = vadd.xlane.f32.xlu0 %v165
      %v167 = vpop.xlane.xlu0 %166
      %v168 = vmul.f32 %v146, 0.00390625
      %v169 = vmul.f32 %v149, 0.00390625
      %v170 = vmul.f32 %v152, 0.00390625
      %v171 = vmul.f32 %v155, 0.00390625
      %v172 = vmul.f32 %v158, 0.00390625
      %v173 = vmul.f32 %v161, 0.00390625
      %v174 = vmul.f32 %v164, 0.00390625
      %v175 = vmul.f32 %v167, 0.00390625
      %v176 = vld [vmem:[#allocation6] sm:$0xf]
      %v177 = vld [vmem:[%s2] sm:$0x1]
      %v179 = vperm.slane %v177, 0
      %v189 = vlaneseq
      %v190 = vand.u32 %v189, 127
      %v191 = vperm.slane %v168, %v190
      %v192 = vperm.slane %v169, %v190
      %v193 = vperm.slane %v170, %v190
      %v194 = vperm.slane %v171, %v190
      %v195 = vperm.slane %v172, %v190
      %v196 = vperm.slane %v173, %v190
      %v197 = vperm.slane %v174, %v190
      %v198 = vperm.slane %v175, %v190
      %vm199 = vcmask 1041409
      %v200 = vsel %vm199, %v192, %v191
      %vm201 = vcmask 1042434
      %v202 = vsel %vm201, %v193, %v200
      %vm203 = vcmask 1043459
      %v204 = vsel %vm203, %v194, %v202
      %vm205 = vcmask 1044484
      %v206 = vsel %vm205, %v195, %v204
      %vm207 = vcmask 1045509
      %v208 = vsel %vm207, %v196, %v206
      %vm209 = vcmask 1046534
      %v210 = vsel %vm209, %v197, %v208
      %vm211 = vcmask 1047559
      %v212 = vsel %vm211, %v198, %v210
      %vm213 = vcmask 31744
      %v214 = vsel %vm213, %v212, 0
      %v217 = vsel %vm143, %v176, 0
      %219 = vmatpush.msra.mxu0 0.0
      %220 = vmatpush.msra.mxu0 0.0
      %221 = vmatpush.msra.mxu0 0.0
      %222 = vmatpush.msra.mxu0 0.0
      %223 = vmatpush.msra.mxu0 0.0
      %224 = vmatpush.msra.mxu0 0.0
      %225 = vmatpush.msra.mxu0 0.0
      %226 = vmatpush.msra.mxu0 0.0
      %227 = vmatpush.msra.mxu0 0.0
      %228 = vmatpush.msra.mxu0 0.0
      %229 = vmatpush.msra.mxu0 0.0
      %230 = vmatpush.msra.mxu0 0.0
      %231 = vmatpush.msra.mxu0 0.0
      %232 = vmatpush.msra.mxu0 0.0
      %233 = vmatpush.msra.mxu0 0.0
      %234 = vmatpush.msra.mxu0 %v217
      %235 = vmatmul.f32.gmra.mxu0 %v214
      %v236 = vpop.f32.mrf.mxu0
      %v237 = vadd.f32 %v179, %v236
      %238 = vdwg.mxu0
      %239 = vst [vmem:[#allocation8] sm:$0xff] %v237
    $region29: #{tpu_custom_call.1} parent=1 // pred_fallthru
      _
    // Predicated region
    $region30: #{tpu_custom_call.1} parent=1 // pred_check
      _
    $region31: #{tpu_custom_call.1} parent=1 // pred_check_branch
      %241 = sbr.rel (0) target = $region33
    $region32: #{tpu_custom_call.1} parent=1 // pred_region
      %243 = vsyncadd [#allocation5], 96
      %s244 = sshll.u32 [#allocation8], 4
      %s245 = int_to_ptr.vmem [resolvable:$true] %s244
      %s246 = sshll.u32 %s3, 4
      %s247 = int_to_ptr.hbm [resolvable:$true] %s246
      %252 = dma.vmem_to_hbm [thread:$0]  %s245, 32, %s247, [#allocation5], 32, 32, 2
    $region33: #{tpu_custom_call.1} parent=1 // pred_fallthru
      _
    // Predicated region
    $region34: #{tpu_custom_call.1} parent=1 // pred_check
      _
    $region35: #{tpu_custom_call.1} parent=1 // pred_check_branch
      %254 = sbr.rel (0) target = $region37
    $region36: #{tpu_custom_call.1} parent=1 // pred_region
      %256 = dma.done [#allocation5], 128
    $region37: #{tpu_custom_call.1} parent=1 // pred_fallthru
      _
    %257 = vsyncpa [#allocation4], 1
    %258 = vsyncpa [#allocation7], 1
    %259 = vsyncpa [#allocation5], 1

</llo_original>
